<compile_context>
chip_gen: v7x
topology: tpu7x:2x2x1
jax: 0.10.0
libtpu: 0.0.40
codegen_flags: <defaults>
</compile_context>

<pallas_src>
import jax
import jax.numpy as jnp
from jax.experimental import pallas as pl
from jax.experimental.pallas import tpu as pltpu


def _generator_kernel(z_ref, w1_ref, b1_ref, w23_ref, b23_ref, o_ref):
    # Layer 1: Linear(latent_dim -> 64) + ReLU   (bf16 operands, f32 accumulate)
    h = jnp.dot(z_ref[...], w1_ref[...], preferred_element_type=jnp.float32)
    h = jnp.maximum(h + b1_ref[...], 0.0)
    # Fused layers 2+3: Linear(64->64) followed by Linear(64->N) is a single
    # Linear(64->N) with W23 = w2 @ w3, b23 = b2 @ w3 + b3 (folded in wrapper).
    h = jnp.dot(h.astype(jnp.bfloat16), w23_ref[...],
                preferred_element_type=jnp.float32)
    h = h + b23_ref[...]
    # sigmoid(h) = 1 / (1 + exp(-h)): exp + approx reciprocal both hit the EUP
    # slot, keeping the VALU free.
    o_ref[...] = pl.reciprocal(1.0 + jnp.exp(-h), approx=True).astype(o_ref.dtype)


def _pick_batch_tile(batch):
    """Largest row tile <= 1024 that evenly divides the batch."""
    if batch <= 1024:
        return batch
    for t in (1024, 896, 768, 640, 512, 384, 256, 128, 64, 32, 16, 8):
        if batch % t == 0:
            return t
    return batch  # fall back to a single tile


def prepare_generator_params(params):
    """Fold layers 2+3, pad the output dim to a multiple of 128 (lane-dense
    stores) and cast matmul operands to bf16.  Run once at init time."""
    w23 = params["w2"] @ params["w3"]                  # (64, n_elements)
    b23 = params["b2"] @ params["w3"] + params["b3"]   # (1,  n_elements)
    n_elements = w23.shape[1]
    n_pad = ((n_elements + 127) // 128) * 128
    extra = n_pad - n_elements
    if extra:
        w23 = jnp.pad(w23, ((0, 0), (0, extra)))
        b23 = jnp.pad(b23, ((0, 0), (0, extra)))
    return {
        "w1": params["w1"].astype(jnp.bfloat16),
        "b1": params["b1"].astype(jnp.float32),
        "w23": w23.astype(jnp.bfloat16),
        "b23": b23.astype(jnp.float32),
        "n_elements": n_elements,
    }


def generator_forward(z, prep, *, batch_tile=None):
    """Fused Generator forward pass as a single Pallas kernel.

    z:    (B, latent_dim) float32
    prep: output of prepare_generator_params (folded / padded / bf16 weights).
    """
    B, latent_dim = z.shape
    w1, b1, w23, b23 = prep["w1"], prep["b1"], prep["w23"], prep["b23"]
    n_elements = prep["n_elements"]
    n_pad = w23.shape[1]

    tb = batch_tile if batch_tile is not None else _pick_batch_tile(B)
    if tb != B:
        if B % tb != 0:
            raise ValueError(f"batch_tile={tb} must divide batch={B}")
        if tb % 8 != 0:
            raise ValueError(f"batch_tile={tb} must be a multiple of 8 "
                             "(f32 sublane / (8,128) block rule)")
    grid = (B // tb,)

    z_bf16 = z.astype(jnp.bfloat16)

    def _const_spec(arr, pipeline_mode):
        # Grid-invariant operand: always block (0, 0).
        if pipeline_mode is None:
            return pl.BlockSpec(arr.shape, lambda i: (0, 0))
        return pl.BlockSpec(arr.shape, lambda i: (0, 0),
                            pipeline_mode=pipeline_mode)

    def _call(single_buffer_consts):
        pm = pl.Buffered(1) if single_buffer_consts else None
        return pl.pallas_call(
            _generator_kernel,
            out_shape=jax.ShapeDtypeStruct((B, n_pad), jnp.float32),
            grid_spec=pltpu.PrefetchScalarGridSpec(
                num_scalar_prefetch=0,
                grid=grid,
                in_specs=[
                    pl.BlockSpec((tb, latent_dim), lambda i: (i, 0)),  # z tile
                    _const_spec(w1, pm), _const_spec(b1, pm),
                    _const_spec(w23, pm), _const_spec(b23, pm),
                ],
                out_specs=pl.BlockSpec((tb, n_pad), lambda i: (i, 0)),
            ),
            compiler_params=pltpu.CompilerParams(
                dimension_semantics=("parallel",),
                vmem_limit_bytes=64 * 1024 * 1024,
            ),
        )(z_bf16, w1, b1, w23, b23)

    try:
        out = _call(True)       # single-buffered constant weights
    except Exception:
        out = _call(False)      # fallback if pipeline_mode hint is rejected

    return out[:, :n_elements]


def init_generator_params(key, latent_dim, n_elements):
    """Deterministic init mimicking nn.Linear's U(-1/sqrt(fan_in), 1/sqrt(fan_in)).
    Weights stored transposed as (in_features, out_features)."""
    ks = jax.random.split(key, 6)

    def linear(kw, kb, fan_in, fan_out):
        bound = 1.0 / jnp.sqrt(fan_in)
        w = jax.random.uniform(kw, (fan_in, fan_out), jnp.float32, -bound, bound)
        b = jax.random.uniform(kb, (1, fan_out), jnp.float32, -bound, bound)
        return w, b

    w1, b1 = linear(ks[0], ks[1], latent_dim, 64)
    w2, b2 = linear(ks[2], ks[3], 64, 64)
    w3, b3 = linear(ks[4], ks[5], 64, n_elements)
    return {"w1": w1, "b1": b1, "w2": w2, "b2": b2, "w3": w3, "b3": b3}


def generator_reference(z, p):
    """Pure-JAX f32 reference of the original (unfolded) forward pass."""
    h = jnp.maximum(z @ p["w1"] + p["b1"], 0.0)
    h = h @ p["w2"] + p["b2"]
    h = h @ p["w3"] + p["b3"]
    return jax.nn.sigmoid(h)


if __name__ == "__main__":
    latent_dim = 32
    n_elements = 16
    batch = 8

    key = jax.random.PRNGKey(0)
    k_params, k_z = jax.random.split(key)
    params = init_generator_params(k_params, latent_dim, n_elements)
    prep = prepare_generator_params(params)
    z = jax.random.normal(k_z, (batch, latent_dim), dtype=jnp.float32)

    out = generator_forward(z, prep)
    out = jax.block_until_ready(out)

    ref = generator_reference(z, params)
    assert out.shape == (batch, n_elements)
    # bf16 matmul operands + approx reciprocal vs f32 reference.
    assert jnp.allclose(out, ref, atol=2e-2, rtol=0.0), "mismatch vs reference"

    print("KERNEL_OK")
</pallas_src>

<mosaic_0001>
module attributes {stable_mosaic.version = 11 : i64} {
  func.func @_generator_kernel(%arg0: i32, %arg1: memref<8x32xbf16, #tpu.memory_space<vmem>>, %arg2: memref<32x64xbf16, #tpu.memory_space<vmem>>, %arg3: memref<1x64xf32, #tpu.memory_space<vmem>>, %arg4: memref<64x128xbf16, #tpu.memory_space<vmem>>, %arg5: memref<1x128xf32, #tpu.memory_space<vmem>>, %arg6: memref<8x128xf32, #tpu.memory_space<vmem>>) attributes {dimension_semantics = [#tpu.dimension_semantics<parallel>], iteration_bounds = array<i64: 1>, scalar_prefetch = 0 : i64, scratch_operands = 0 : i64, tpu.core_type = #tpu.core_type<tc>, window_params = [{transform_indices = @transform_0, window_bounds = array<i64: 8, 32>}, {pipeline_mode = #tpu.pipeline_mode<synchronous>, transform_indices = @transform_1, window_bounds = array<i64: 32, 64>}, {pipeline_mode = #tpu.pipeline_mode<synchronous>, transform_indices = @transform_2, window_bounds = array<i64: 1, 64>}, {pipeline_mode = #tpu.pipeline_mode<synchronous>, transform_indices = @transform_3, window_bounds = array<i64: 64, 128>}, {pipeline_mode = #tpu.pipeline_mode<synchronous>, transform_indices = @transform_4, window_bounds = array<i64: 1, 128>}, {transform_indices = @transform_5, window_bounds = array<i64: 8, 128>}]} {
    %c0 = arith.constant 0 : index
    %c0_0 = arith.constant 0 : index
    %0 = vector.load %arg1[%c0, %c0_0] : memref<8x32xbf16, #tpu.memory_space<vmem>>, vector<8x32xbf16>
    %c0_1 = arith.constant 0 : index
    %c0_2 = arith.constant 0 : index
    %1 = vector.load %arg2[%c0_1, %c0_2] : memref<32x64xbf16, #tpu.memory_space<vmem>>, vector<32x64xbf16>
    %cst = arith.constant dense<0.000000e+00> : vector<8x64xf32>
    %2 = tpu.matmul %0, %1, %cst {dimension_numbers = #tpu.dot_dimension_numbers<[1], [0], [0], [1], [0, 0, 1, 1], [], []>} : vector<8x32xbf16>, vector<32x64xbf16>, vector<8x64xf32> -> vector<8x64xf32>
    %c0_3 = arith.constant 0 : index
    %c0_4 = arith.constant 0 : index
    %3 = vector.load %arg3[%c0_3, %c0_4] : memref<1x64xf32, #tpu.memory_space<vmem>>, vector<1x64xf32>
    %4 = vector.broadcast %3 : vector<1x64xf32> to vector<8x64xf32>
    %5 = arith.addf %2, %4 : vector<8x64xf32>
    %cst_5 = arith.constant 0.000000e+00 : f32
    %6 = vector.broadcast %cst_5 : f32 to vector<8x64xf32>
    %7 = arith.maximumf %5, %6 : vector<8x64xf32>
    %8 = arith.truncf %7 : vector<8x64xf32> to vector<8x64xbf16>
    %c0_6 = arith.constant 0 : index
    %c0_7 = arith.constant 0 : index
    %9 = vector.load %arg4[%c0_6, %c0_7] : memref<64x128xbf16, #tpu.memory_space<vmem>>, vector<64x128xbf16>
    %cst_8 = arith.constant dense<0.000000e+00> : vector<8x128xf32>
    %10 = tpu.matmul %8, %9, %cst_8 {dimension_numbers = #tpu.dot_dimension_numbers<[1], [0], [0], [1], [0, 0, 1, 1], [], []>} : vector<8x64xbf16>, vector<64x128xbf16>, vector<8x128xf32> -> vector<8x128xf32>
    %c0_9 = arith.constant 0 : index
    %c0_10 = arith.constant 0 : index
    %11 = vector.load %arg5[%c0_9, %c0_10] : memref<1x128xf32, #tpu.memory_space<vmem>>, vector<1x128xf32>
    %12 = vector.broadcast %11 : vector<1x128xf32> to vector<8x128xf32>
    %13 = arith.addf %10, %12 : vector<8x128xf32>
    %cst_11 = arith.constant 0.000000e+00 : f32
    %14 = vector.broadcast %cst_11 : f32 to vector<8x128xf32>
    %15 = arith.subf %14, %13 : vector<8x128xf32>
    %16 = math.exp %15 : vector<8x128xf32>
    %cst_12 = arith.constant 1.000000e+00 : f32
    %17 = vector.broadcast %cst_12 : f32 to vector<8x128xf32>
    %18 = arith.addf %17, %16 : vector<8x128xf32>
    %19 = tpu.reciprocal %18 {approx = true} : vector<8x128xf32> -> vector<8x128xf32>
    %c0_13 = arith.constant 0 : index
    %c0_14 = arith.constant 0 : index
    %20 = vector.load %arg6[%c0_13, %c0_14] : memref<8x128xf32, #tpu.memory_space<vmem>>, vector<8x128xf32>
    tpu.vector_store %arg6[%c0_13, %c0_14], %19 {strides = array<i32>} : memref<8x128xf32, #tpu.memory_space<vmem>>, vector<8x128xf32>,
    return
  }
  func.func @transform_0(%arg0: i32) -> (i32, i32) {
    %c0_i32 = arith.constant 0 : i32
    %c0_i32_0 = arith.constant 0 : i32
    return %arg0, %c0_i32 : i32, i32
  }
  func.func @transform_1(%arg0: i32) -> (i32, i32) {
    %c0_i32 = arith.constant 0 : i32
    %c0_i32_0 = arith.constant 0 : i32
    %c0_i32_1 = arith.constant 0 : i32
    return %c0_i32, %c0_i32_0 : i32, i32
  }
  func.func @transform_2(%arg0: i32) -> (i32, i32) {
    %c0_i32 = arith.constant 0 : i32
    %c0_i32_0 = arith.constant 0 : i32
    %c0_i32_1 = arith.constant 0 : i32
    return %c0_i32, %c0_i32_0 : i32, i32
  }
  func.func @transform_3(%arg0: i32) -> (i32, i32) {
    %c0_i32 = arith.constant 0 : i32
    %c0_i32_0 = arith.constant 0 : i32
    %c0_i32_1 = arith.constant 0 : i32
    return %c0_i32, %c0_i32_0 : i32, i32
  }
  func.func @transform_4(%arg0: i32) -> (i32, i32) {
    %c0_i32 = arith.constant 0 : i32
    %c0_i32_0 = arith.constant 0 : i32
    %c0_i32_1 = arith.constant 0 : i32
    return %c0_i32, %c0_i32_0 : i32, i32
  }
  func.func @transform_5(%arg0: i32) -> (i32, i32) {
    %c0_i32 = arith.constant 0 : i32
    %c0_i32_0 = arith.constant 0 : i32
    return %arg0, %c0_i32 : i32, i32
  }
}

module attributes {stable_mosaic.version = 11 : i64} {
  func.func @_generator_kernel(%arg0: i32, %arg1: memref<8x32xbf16, #tpu.memory_space<vmem>>, %arg2: memref<32x64xbf16, #tpu.memory_space<vmem>>, %arg3: memref<1x64xf32, #tpu.memory_space<vmem>>, %arg4: memref<64x128xbf16, #tpu.memory_space<vmem>>, %arg5: memref<1x128xf32, #tpu.memory_space<vmem>>, %arg6: memref<8x128xf32, #tpu.memory_space<vmem>>) attributes {dimension_semantics = [#tpu.dimension_semantics<parallel>], iteration_bounds = array<i64: 1>, scalar_prefetch = 0 : i64, scratch_operands = 0 : i64, tpu.core_type = #tpu.core_type<tc>, window_params = [{transform_indices = @transform_0, window_bounds = array<i64: 8, 32>}, {pipeline_mode = #tpu.pipeline_mode<synchronous>, transform_indices = @transform_1, window_bounds = array<i64: 32, 64>}, {pipeline_mode = #tpu.pipeline_mode<synchronous>, transform_indices = @transform_2, window_bounds = array<i64: 1, 64>}, {pipeline_mode = #tpu.pipeline_mode<synchronous>, transform_indices = @transform_3, window_bounds = array<i64: 64, 128>}, {pipeline_mode = #tpu.pipeline_mode<synchronous>, transform_indices = @transform_4, window_bounds = array<i64: 1, 128>}, {transform_indices = @transform_5, window_bounds = array<i64: 8, 128>}]} {
    %c0 = arith.constant 0 : index
    %c0_0 = arith.constant 0 : index
    %0 = vector.load %arg1[%c0, %c0_0] : memref<8x32xbf16, #tpu.memory_space<vmem>>, vector<8x32xbf16>
    %c0_1 = arith.constant 0 : index
    %c0_2 = arith.constant 0 : index
    %1 = vector.load %arg2[%c0_1, %c0_2] : memref<32x64xbf16, #tpu.memory_space<vmem>>, vector<32x64xbf16>
    %cst = arith.constant dense<0.000000e+00> : vector<8x64xf32>
    %2 = tpu.matmul %0, %1, %cst {dimension_numbers = #tpu.dot_dimension_numbers<[1], [0], [0], [1], [0, 0, 1, 1], [], []>} : vector<8x32xbf16>, vector<32x64xbf16>, vector<8x64xf32> -> vector<8x64xf32>
    %c0_3 = arith.constant 0 : index
    %c0_4 = arith.constant 0 : index
    %3 = vector.load %arg3[%c0_3, %c0_4] : memref<1x64xf32, #tpu.memory_space<vmem>>, vector<1x64xf32>
    %4 = vector.broadcast %3 : vector<1x64xf32> to vector<8x64xf32>
    %5 = arith.addf %2, %4 : vector<8x64xf32>
    %cst_5 = arith.constant 0.000000e+00 : f32
    %6 = vector.broadcast %cst_5 : f32 to vector<8x64xf32>
    %7 = arith.maximumf %5, %6 : vector<8x64xf32>
    %8 = arith.truncf %7 : vector<8x64xf32> to vector<8x64xbf16>
    %c0_6 = arith.constant 0 : index
    %c0_7 = arith.constant 0 : index
    %9 = vector.load %arg4[%c0_6, %c0_7] : memref<64x128xbf16, #tpu.memory_space<vmem>>, vector<64x128xbf16>
    %cst_8 = arith.constant dense<0.000000e+00> : vector<8x128xf32>
    %10 = tpu.matmul %8, %9, %cst_8 {dimension_numbers = #tpu.dot_dimension_numbers<[1], [0], [0], [1], [0, 0, 1, 1], [], []>} : vector<8x64xbf16>, vector<64x128xbf16>, vector<8x128xf32> -> vector<8x128xf32>
    %c0_9 = arith.constant 0 : index
    %c0_10 = arith.constant 0 : index
    %11 = vector.load %arg5[%c0_9, %c0_10] : memref<1x128xf32, #tpu.memory_space<vmem>>, vector<1x128xf32>
    %12 = vector.broadcast %11 : vector<1x128xf32> to vector<8x128xf32>
    %13 = arith.addf %10, %12 : vector<8x128xf32>
    %cst_11 = arith.constant 0.000000e+00 : f32
    %14 = vector.broadcast %cst_11 : f32 to vector<8x128xf32>
    %15 = arith.subf %14, %13 : vector<8x128xf32>
    %16 = math.exp %15 : vector<8x128xf32>
    %cst_12 = arith.constant 1.000000e+00 : f32
    %17 = vector.broadcast %cst_12 : f32 to vector<8x128xf32>
    %18 = arith.addf %17, %16 : vector<8x128xf32>
    %19 = tpu.reciprocal %18 {approx = true} : vector<8x128xf32> -> vector<8x128xf32>
    %c0_13 = arith.constant 0 : index
    %c0_14 = arith.constant 0 : index
    %20 = vector.load %arg6[%c0_13, %c0_14] : memref<8x128xf32, #tpu.memory_space<vmem>>, vector<8x128xf32>
    tpu.vector_store %arg6[%c0_13, %c0_14], %19 {strides = array<i32>} : memref<8x128xf32, #tpu.memory_space<vmem>>, vector<8x128xf32>,
    return
  }
  func.func @transform_0(%arg0: i32) -> (i32, i32) {
    %c0_i32 = arith.constant 0 : i32
    %c0_i32_0 = arith.constant 0 : i32
    return %arg0, %c0_i32 : i32, i32
  }
  func.func @transform_1(%arg0: i32) -> (i32, i32) {
    %c0_i32 = arith.constant 0 : i32
    %c0_i32_0 = arith.constant 0 : i32
    %c0_i32_1 = arith.constant 0 : i32
    return %c0_i32, %c0_i32_0 : i32, i32
  }
  func.func @transform_2(%arg0: i32) -> (i32, i32) {
    %c0_i32 = arith.constant 0 : i32
    %c0_i32_0 = arith.constant 0 : i32
    %c0_i32_1 = arith.constant 0 : i32
    return %c0_i32, %c0_i32_0 : i32, i32
  }
  func.func @transform_3(%arg0: i32) -> (i32, i32) {
    %c0_i32 = arith.constant 0 : i32
    %c0_i32_0 = arith.constant 0 : i32
    %c0_i32_1 = arith.constant 0 : i32
    return %c0_i32, %c0_i32_0 : i32, i32
  }
  func.func @transform_4(%arg0: i32) -> (i32, i32) {
    %c0_i32 = arith.constant 0 : i32
    %c0_i32_0 = arith.constant 0 : i32
    %c0_i32_1 = arith.constant 0 : i32
    return %c0_i32, %c0_i32_0 : i32, i32
  }
  func.func @transform_5(%arg0: i32) -> (i32, i32) {
    %c0_i32 = arith.constant 0 : i32
    %c0_i32_0 = arith.constant 0 : i32
    return %arg0, %c0_i32 : i32, i32
  }
}

</mosaic_0001>

<llo_original>
// kernel: tpu_custom_call.1
$region0: #{tpu_custom_call.1}
  #allocation0 [shape = 'u32[]', space=smem, size = 0x4, offset = 0x4, fixed_abs, tag = 'smem constant byte address 0x4 - core index']
  #allocation1 [shape = 'u32[144,128]{1,0:T(1,128)}', space=vmem, size = 0x12000, scoped, tag = 'internal scratch']
  %s0 = inlined_call_operand.hbm [shape: bf16[8,32], index: 0, kind: input, shape index: {}]
  %s1 = inlined_call_operand.hbm [shape: bf16[32,64], index: 1, kind: input, shape index: {}]
  %s2 = inlined_call_operand.hbm [shape: f32[1,64], index: 2, kind: input, shape index: {}]
  %s3 = inlined_call_operand.hbm [shape: bf16[64,128], index: 3, kind: input, shape index: {}]
  %s4 = inlined_call_operand.hbm [shape: f32[1,128], index: 4, kind: input, shape index: {}]
  %s5 = inlined_call_operand.hbm [shape: f32[8,128], index: 5, kind: output, shape index: {}]
  %s6 = sld [smem:[#allocation0]]
  $region50: #{tpu_custom_call.1} parent=0
    _
  %s8 = ssub.s32 1, %s6
  %s9 = scalar_select 0, %s8, %s6
  $region1: #{tpu_custom_call.1} parent=0
    #allocation2 [shape = 'u8[2048]{0}', space=vmem, size = 0x800, scoped, tag = 'input window, operand 0, single buffered']
    #allocation3 [shape = 's32[1]{0}', space=sflag, size = 0x4, scoped, tag = 'scoped memory for tpu_custom_call.1']
    #allocation4 [shape = 's32[1]{0}', space=sflag, size = 0x4, scoped, tag = 'scoped memory for tpu_custom_call.1']
    #allocation5 [shape = 'u8[8192]{0}', space=vmem, size = 0x2000, scoped, tag = 'input window, operand 1, single buffered']
    #allocation6 [shape = 's32[1]{0}', space=sflag, size = 0x4, scoped, tag = 'scoped memory for tpu_custom_call.1']
    #allocation7 [shape = 'u8[512]{0}', space=vmem, size = 0x400, scoped, tag = 'input window, operand 2, single buffered']
    #allocation8 [shape = 'u8[16384]{0}', space=vmem, size = 0x4000, scoped, tag = 'input window, operand 3, single buffered']
    #allocation9 [shape = 's32[1]{0}', space=sflag, size = 0x4, scoped, tag = 'scoped memory for tpu_custom_call.1']
    #allocation10 [shape = 'u8[512]{0}', space=vmem, size = 0x400, scoped, tag = 'input window, operand 4, single buffered']
    #allocation11 [shape = 'u8[4096]{0}', space=vmem, size = 0x1000, scoped, tag = 'output window, operand 0, single buffered']
    %10 = vsyncpa [#allocation3], 0
    %11 = vsyncpa [#allocation6], 0
    %12 = vsyncpa [#allocation9], 0
    %13 = vsyncpa [#allocation4], 0
    // Predicated region
    $region2: #{tpu_custom_call.1} parent=1 // pred_check
      _
    $region3: #{tpu_custom_call.1} parent=1 // pred_check_branch
      %15 = sbr.rel (0) target = $region5
    $region4: #{tpu_custom_call.1} parent=1 // pred_region
      %s17 = ssub.s32 64, 64
      %18 = vsyncadd [#allocation3], %s17
      %s20 = sshll.u32 [#allocation2], 4
      %s21 = int_to_ptr.vmem [resolvable:$true] %s20
      %23 = dma.hbm_to_vmem [thread:$0]  %s0, 64, %s21, [#allocation3]
    $region5: #{tpu_custom_call.1} parent=1 // pred_fallthru
      _
    // Predicated region
    $region6: #{tpu_custom_call.1} parent=1 // pred_check
      _
    $region7: #{tpu_custom_call.1} parent=1 // pred_check_branch
      %25 = sbr.rel (0) target = $region9
    $region8: #{tpu_custom_call.1} parent=1 // pred_region
      %s27 = ssub.s32 256, 256
      %28 = vsyncadd [#allocation6], %s27
      %s29 = sshll.u32 [#allocation5], 4
      %s30 = int_to_ptr.vmem [resolvable:$true] %s29
      %35 = dma.hbm_to_vmem [thread:$0]  %s1, 256, %s30, [#allocation6], 64, 64, 4
    $region9: #{tpu_custom_call.1} parent=1 // pred_fallthru
      _
    // Predicated region
    $region10: #{tpu_custom_call.1} parent=1 // pred_check
      _
    $region11: #{tpu_custom_call.1} parent=1 // pred_check_branch
      %37 = sbr.rel (0) target = $region13
    $region12: #{tpu_custom_call.1} parent=1 // pred_region
      %s39 = ssub.s32 16, 16
      %40 = vsyncadd [#allocation6], %s39
      %s42 = sshll.u32 [#allocation7], 4
      %s43 = int_to_ptr.vmem [resolvable:$true] %s42
      %45 = dma.hbm_to_vmem [thread:$0]  %s2, 16, %s43, [#allocation6]
    $region13: #{tpu_custom_call.1} parent=1 // pred_fallthru
      _
    // Predicated region
    $region14: #{tpu_custom_call.1} parent=1 // pred_check
      _
    $region15: #{tpu_custom_call.1} parent=1 // pred_check_branch
      %47 = sbr.rel (0) target = $region17
    $region16: #{tpu_custom_call.1} parent=1 // pred_region
      %s49 = ssub.s32 512, 512
      %50 = vsyncadd [#allocation9], %s49
      %s51 = sshll.u32 [#allocation8], 4
      %s52 = int_to_ptr.vmem [resolvable:$true] %s51
      %57 = dma.hbm_to_vmem [thread:$0]  %s3, 512, %s52, [#allocation9], 64, 64, 4
    $region17: #{tpu_custom_call.1} parent=1 // pred_fallthru
      _
    // Predicated region
    $region18: #{tpu_custom_call.1} parent=1 // pred_check
      _
    $region19: #{tpu_custom_call.1} parent=1 // pred_check_branch
      %59 = sbr.rel (0) target = $region21
    $region20: #{tpu_custom_call.1} parent=1 // pred_region
      %s61 = ssub.s32 16, 16
      %62 = vsyncadd [#allocation9], %s61
      %s64 = sshll.u32 [#allocation10], 4
      %s65 = int_to_ptr.vmem [resolvable:$true] %s64
      %67 = dma.hbm_to_vmem [thread:$0]  %s4, 16, %s65, [#allocation9]
    $region21: #{tpu_custom_call.1} parent=1 // pred_fallthru
      _
    // Predicated region
    $region22: #{tpu_custom_call.1} parent=1 // pred_check
      _
    $region23: #{tpu_custom_call.1} parent=1 // pred_check_branch
      %69 = sbr.rel (0) target = $region25
    $region24: #{tpu_custom_call.1} parent=1 // pred_region
      %70 = dma.done [#allocation3], 64
    $region25: #{tpu_custom_call.1} parent=1 // pred_fallthru
      _
    // Predicated region
    $region26: #{tpu_custom_call.1} parent=1 // pred_check
      _
    $region27: #{tpu_custom_call.1} parent=1 // pred_check_branch
      %72 = sbr.rel (0) target = $region29
    $region28: #{tpu_custom_call.1} parent=1 // pred_region
      %73 = dma.done [#allocation6], 256
    $region29: #{tpu_custom_call.1} parent=1 // pred_fallthru
      _
    // Predicated region
    $region30: #{tpu_custom_call.1} parent=1 // pred_check
      _
    $region31: #{tpu_custom_call.1} parent=1 // pred_check_branch
      %75 = sbr.rel (0) target = $region33
    $region32: #{tpu_custom_call.1} parent=1 // pred_region
      %76 = dma.done [#allocation6], 16
    $region33: #{tpu_custom_call.1} parent=1 // pred_fallthru
      _
    // Predicated region
    $region34: #{tpu_custom_call.1} parent=1 // pred_check
      _
    $region35: #{tpu_custom_call.1} parent=1 // pred_check_branch
      %78 = sbr.rel (0) target = $region37
    $region36: #{tpu_custom_call.1} parent=1 // pred_region
      %79 = dma.done [#allocation9], 512
    $region37: #{tpu_custom_call.1} parent=1 // pred_fallthru
      _
    // Predicated region
    $region38: #{tpu_custom_call.1} parent=1 // pred_check
      _
    $region39: #{tpu_custom_call.1} parent=1 // pred_check_branch
      %81 = sbr.rel (0) target = $region41
    $region40: #{tpu_custom_call.1} parent=1 // pred_region
      %82 = dma.done [#allocation9], 16
    $region41: #{tpu_custom_call.1} parent=1 // pred_fallthru
      _
    %v84 = vld [vmem:[#allocation2] sm:$0xf]
    %v85 = vld [vmem:[#allocation5] sm:$0xf]
    %v86 = vld [vmem:[#allocation5 + $0x4] sm:$0xf]
    %v87 = vld [vmem:[#allocation5 + $0x8] sm:$0xf]
    %v88 = vld [vmem:[#allocation5 + $0xc] sm:$0xf]
    %v89 = vld [vmem:[#allocation7] sm:$0x1]
    %v91 = vlaneseq
    %v92 = vshrl.u32 %v91, 7
    %v93 = vsub.s32 0, %v92
    %v94 = vrot.slane %v89, %v93
    %v100 = vunpack.c.l.b16 %v85
    %v101 = vunpack.c.l.b16 %v86
    %v102 = vunpack.c.l.b16 %v87
    %v103 = vunpack.c.l.b16 %v88
    %v104 = vpack.c.b16 %v101, %v100
    %v105 = vpack.c.b16 %v103, %v102
    %vm108 = vcmask 261120
    %v110 = vsel %vm108, %v84, 0
    %112 = vmatprep.subr.bf16.mxu0 0
    %113 = vmatpush1.bf16.msra.mxu0 %v104
    %114 = vmatprep.subr.bf16.mxu0 0
    %115 = vmatpush1.bf16.msra.mxu0 %v105
    %116 = vmatprep.subr.bf16.mxu0 0
    %117 = vmatpush1.bf16.msra.mxu0 0
    %118 = vmatprep.subr.bf16.mxu0 0
    %119 = vmatpush1.bf16.msra.mxu0 0
    %120 = vmatprep.subr.bf16.mxu0 0
    %121 = vmatpush1.bf16.msra.mxu0 0
    %122 = vmatprep.subr.bf16.mxu0 0
    %123 = vmatpush1.bf16.msra.mxu0 0
    %124 = vmatprep.subr.bf16.mxu0 0
    %125 = vmatpush1.bf16.msra.mxu0 0
    %126 = vmatprep.subr.bf16.mxu0 0
    %127 = vmatpush1.bf16.msra.mxu0 0
    %128 = vmatprep.subr.bf16.mxu0 0
    %129 = vmatpush1.bf16.msra.mxu0 0
    %130 = vmatprep.subr.bf16.mxu0 0
    %131 = vmatpush1.bf16.msra.mxu0 0
    %132 = vmatprep.subr.bf16.mxu0 0
    %133 = vmatpush1.bf16.msra.mxu0 0
    %134 = vmatprep.subr.bf16.mxu0 0
    %135 = vmatpush1.bf16.msra.mxu0 0
    %136 = vmatprep.subr.bf16.mxu0 0
    %137 = vmatpush1.bf16.msra.mxu0 0
    %138 = vmatprep.subr.bf16.mxu0 0
    %139 = vmatpush1.bf16.msra.mxu0 0
    %140 = vmatprep.subr.bf16.mxu0 0
    %141 = vmatpush1.bf16.msra.mxu0 0
    %142 = vmatprep.subr.bf16.mxu0 0
    %143 = vmatpush1.bf16.msra.mxu0 0
    %144 = vmatprep.mubr.bf16.mxu0 0
    %145 = vmatmul.mubr.bf16.gmra.mrb[0].mxu0 %v110
    %v146 = vpop.f32.mrb[0].mxu0
    %v147 = vadd.f32 %v94, %v146
    %v148 = vpop.f32.mrb[0].mxu0
    %v149 = vpop.f32.mrb[0].mxu0
    %v150 = vpop.f32.mrb[0].mxu0
    %151 = vdwg.mxu0
    %v152 = vmax.f32 %v147, 0.0
    %v153 = vpack.c.bf16 %v152, %v152
    %v154 = vld [vmem:[#allocation8] sm:$0xf]
    %v155 = vld [vmem:[#allocation8 + $0x4] sm:$0xf]
    %v156 = vld [vmem:[#allocation8 + $0x8] sm:$0xf]
    %v157 = vld [vmem:[#allocation8 + $0xc] sm:$0xf]
    %v158 = vld [vmem:[#allocation8 + $0x10] sm:$0xf]
    %v159 = vld [vmem:[#allocation8 + $0x14] sm:$0xf]
    %v160 = vld [vmem:[#allocation8 + $0x18] sm:$0xf]
    %v161 = vld [vmem:[#allocation8 + $0x1c] sm:$0xf]
    %v162 = vld [vmem:[#allocation10] sm:$0x1]
    %v164 = vlaneseq
    %v165 = vshrl.u32 %v164, 7
    %v166 = vsub.s32 0, %v165
    %v167 = vrot.slane %v162, %v166
    %v177 = vunpack.c.l.b16 %v154
    %v178 = vunpack.c.l.b16 %v155
    %v179 = vunpack.c.l.b16 %v156
    %v180 = vunpack.c.l.b16 %v157
    %v181 = vunpack.c.l.b16 %v158
    %v182 = vunpack.c.l.b16 %v159
    %v183 = vunpack.c.l.b16 %v160
    %v184 = vunpack.c.l.b16 %v161
    %v185 = vpack.c.b16 %v178, %v177
    %v186 = vpack.c.b16 %v180, %v179
    %v187 = vpack.c.b16 %v182, %v181
    %v188 = vpack.c.b16 %v184, %v183
    %vm193 = vcmask 523264
    %v195 = vsel %vm193, %v153, 0
    %197 = vmatprep.subr.bf16.mxu0 0
    %198 = vmatpush1.bf16.msra.mxu0 %v185
    %199 = vmatprep.subr.bf16.mxu0 0
    %200 = vmatpush1.bf16.msra.mxu0 %v186
    %201 = vmatprep.subr.bf16.mxu0 0
    %202 = vmatpush1.bf16.msra.mxu0 %v187
    %203 = vmatprep.subr.bf16.mxu0 0
    %204 = vmatpush1.bf16.msra.mxu0 %v188
    %205 = vmatprep.subr.bf16.mxu0 0
    %206 = vmatpush1.bf16.msra.mxu0 0
    %207 = vmatprep.subr.bf16.mxu0 0
    %208 = vmatpush1.bf16.msra.mxu0 0
    %209 = vmatprep.subr.bf16.mxu0 0
    %210 = vmatpush1.bf16.msra.mxu0 0
    %211 = vmatprep.subr.bf16.mxu0 0
    %212 = vmatpush1.bf16.msra.mxu0 0
    %213 = vmatprep.subr.bf16.mxu0 0
    %214 = vmatpush1.bf16.msra.mxu0 0
    %215 = vmatprep.subr.bf16.mxu0 0
    %216 = vmatpush1.bf16.msra.mxu0 0
    %217 = vmatprep.subr.bf16.mxu0 0
    %218 = vmatpush1.bf16.msra.mxu0 0
    %219 = vmatprep.subr.bf16.mxu0 0
    %220 = vmatpush1.bf16.msra.mxu0 0
    %221 = vmatprep.subr.bf16.mxu0 0
    %222 = vmatpush1.bf16.msra.mxu0 0
    %223 = vmatprep.subr.bf16.mxu0 0
    %224 = vmatpush1.bf16.msra.mxu0 0
    %225 = vmatprep.subr.bf16.mxu0 0
    %226 = vmatpush1.bf16.msra.mxu0 0
    %227 = vmatprep.subr.bf16.mxu0 0
    %228 = vmatpush1.bf16.msra.mxu0 0
    %229 = vmatprep.mubr.bf16.mxu0 0
    %230 = vmatmul.mubr.bf16.gmra.mrb[0].mxu0 %v195
    %v231 = vpop.f32.mrb[0].mxu0
    %v232 = vadd.f32 %v167, %v231
    %v233 = vpop.f32.mrb[0].mxu0
    %v234 = vpop.f32.mrb[0].mxu0
    %v235 = vpop.f32.mrb[0].mxu0
    %236 = vdwg.mxu0
    %v237 = vsub.f32 0.0, %v232
    %v238 = vmul.f32 %v237, 1.442695
    %v239 = vpow.pop %v238
    %v240 = vadd.f32 %v239, 1.0
    %v241 = vrcp.pop %v240
    %242 = vst [vmem:[#allocation11] sm:$0xff] %v241
    // Predicated region
    $region42: #{tpu_custom_call.1} parent=1 // pred_check
      _
    $region43: #{tpu_custom_call.1} parent=1 // pred_check_branch
      %244 = sbr.rel (0) target = $region45
    $region44: #{tpu_custom_call.1} parent=1 // pred_region
      %s246 = ssub.s32 128, 128
      %247 = vsyncadd [#allocation4], %s246
      %s249 = sshll.u32 [#allocation11], 4
      %s250 = int_to_ptr.vmem [resolvable:$true] %s249
      %252 = dma.vmem_to_hbm [thread:$0]  %s250, 128, %s5, [#allocation4]
    $region45: #{tpu_custom_call.1} parent=1 // pred_fallthru
      _
    // Predicated region
    $region46: #{tpu_custom_call.1} parent=1 // pred_check
      _
    $region47: #{tpu_custom_call.1} parent=1 // pred_check_branch
      %254 = sbr.rel (0) target = $region49
    $region48: #{tpu_custom_call.1} parent=1 // pred_region
      %255 = dma.done [#allocation4], 128
    $region49: #{tpu_custom_call.1} parent=1 // pred_fallthru
      _
    %256 = vsyncpa [#allocation3], 1
    %257 = vsyncpa [#allocation6], 1
    %258 = vsyncpa [#allocation9], 1
    %259 = vsyncpa [#allocation4], 1

// kernel: tpu_custom_call.1
$region0: #{tpu_custom_call.1}
  #allocation0 [shape = 'u32[]', space=smem, size = 0x4, offset = 0x4, fixed_abs, tag = 'smem constant byte address 0x4 - core index']
  #allocation1 [shape = 'u32[144,128]{1,0:T(1,128)}', space=vmem, size = 0x12000, scoped, tag = 'internal scratch']
  %s0 = inlined_call_operand.hbm [shape: bf16[8,32], index: 0, kind: input, shape index: {}]
  %s1 = inlined_call_operand.hbm [shape: bf16[32,64], index: 1, kind: input, shape index: {}]
  %s2 = inlined_call_operand.hbm [shape: f32[1,64], index: 2, kind: input, shape index: {}]
  %s3 = inlined_call_operand.hbm [shape: bf16[64,128], index: 3, kind: input, shape index: {}]
  %s4 = inlined_call_operand.hbm [shape: f32[1,128], index: 4, kind: input, shape index: {}]
  %s5 = inlined_call_operand.hbm [shape: f32[8,128], index: 5, kind: output, shape index: {}]
  %s6 = sld [smem:[#allocation0]]
  $region50: #{tpu_custom_call.1} parent=0
    _
  %s8 = ssub.s32 1, %s6
  %s9 = scalar_select 0, %s8, %s6
  $region1: #{tpu_custom_call.1} parent=0
    #allocation2 [shape = 'u8[2048]{0}', space=vmem, size = 0x800, scoped, tag = 'input window, operand 0, single buffered']
    #allocation3 [shape = 's32[1]{0}', space=sflag, size = 0x4, scoped, tag = 'scoped memory for tpu_custom_call.1']
    #allocation4 [shape = 's32[1]{0}', space=sflag, size = 0x4, scoped, tag = 'scoped memory for tpu_custom_call.1']
    #allocation5 [shape = 'u8[8192]{0}', space=vmem, size = 0x2000, scoped, tag = 'input window, operand 1, single buffered']
    #allocation6 [shape = 's32[1]{0}', space=sflag, size = 0x4, scoped, tag = 'scoped memory for tpu_custom_call.1']
    #allocation7 [shape = 'u8[512]{0}', space=vmem, size = 0x400, scoped, tag = 'input window, operand 2, single buffered']
    #allocation8 [shape = 'u8[16384]{0}', space=vmem, size = 0x4000, scoped, tag = 'input window, operand 3, single buffered']
    #allocation9 [shape = 's32[1]{0}', space=sflag, size = 0x4, scoped, tag = 'scoped memory for tpu_custom_call.1']
    #allocation10 [shape = 'u8[512]{0}', space=vmem, size = 0x400, scoped, tag = 'input window, operand 4, single buffered']
    #allocation11 [shape = 'u8[4096]{0}', space=vmem, size = 0x1000, scoped, tag = 'output window, operand 0, single buffered']
    %10 = vsyncpa [#allocation3], 0
    %11 = vsyncpa [#allocation6], 0
    %12 = vsyncpa [#allocation9], 0
    %13 = vsyncpa [#allocation4], 0
    // Predicated region
    $region2: #{tpu_custom_call.1} parent=1 // pred_check
      _
    $region3: #{tpu_custom_call.1} parent=1 // pred_check_branch
      %15 = sbr.rel (0) target = $region5
    $region4: #{tpu_custom_call.1} parent=1 // pred_region
      %s17 = ssub.s32 64, 64
      %18 = vsyncadd [#allocation3], %s17
      %s20 = sshll.u32 [#allocation2], 4
      %s21 = int_to_ptr.vmem [resolvable:$true] %s20
      %23 = dma.hbm_to_vmem [thread:$0]  %s0, 64, %s21, [#allocation3]
    $region5: #{tpu_custom_call.1} parent=1 // pred_fallthru
      _
    // Predicated region
    $region6: #{tpu_custom_call.1} parent=1 // pred_check
      _
    $region7: #{tpu_custom_call.1} parent=1 // pred_check_branch
      %25 = sbr.rel (0) target = $region9
    $region8: #{tpu_custom_call.1} parent=1 // pred_region
      %s27 = ssub.s32 256, 256
      %28 = vsyncadd [#allocation6], %s27
      %s29 = sshll.u32 [#allocation5], 4
      %s30 = int_to_ptr.vmem [resolvable:$true] %s29
      %35 = dma.hbm_to_vmem [thread:$0]  %s1, 256, %s30, [#allocation6], 64, 64, 4
    $region9: #{tpu_custom_call.1} parent=1 // pred_fallthru
      _
    // Predicated region
    $region10: #{tpu_custom_call.1} parent=1 // pred_check
      _
    $region11: #{tpu_custom_call.1} parent=1 // pred_check_branch
      %37 = sbr.rel (0) target = $region13
    $region12: #{tpu_custom_call.1} parent=1 // pred_region
      %s39 = ssub.s32 16, 16
      %40 = vsyncadd [#allocation6], %s39
      %s42 = sshll.u32 [#allocation7], 4
      %s43 = int_to_ptr.vmem [resolvable:$true] %s42
      %45 = dma.hbm_to_vmem [thread:$0]  %s2, 16, %s43, [#allocation6]
    $region13: #{tpu_custom_call.1} parent=1 // pred_fallthru
      _
    // Predicated region
    $region14: #{tpu_custom_call.1} parent=1 // pred_check
      _
    $region15: #{tpu_custom_call.1} parent=1 // pred_check_branch
      %47 = sbr.rel (0) target = $region17
    $region16: #{tpu_custom_call.1} parent=1 // pred_region
      %s49 = ssub.s32 512, 512
      %50 = vsyncadd [#allocation9], %s49
      %s51 = sshll.u32 [#allocation8], 4
      %s52 = int_to_ptr.vmem [resolvable:$true] %s51
      %57 = dma.hbm_to_vmem [thread:$0]  %s3, 512, %s52, [#allocation9], 64, 64, 4
    $region17: #{tpu_custom_call.1} parent=1 // pred_fallthru
      _
    // Predicated region
    $region18: #{tpu_custom_call.1} parent=1 // pred_check
      _
    $region19: #{tpu_custom_call.1} parent=1 // pred_check_branch
      %59 = sbr.rel (0) target = $region21
    $region20: #{tpu_custom_call.1} parent=1 // pred_region
      %s61 = ssub.s32 16, 16
      %62 = vsyncadd [#allocation9], %s61
      %s64 = sshll.u32 [#allocation10], 4
      %s65 = int_to_ptr.vmem [resolvable:$true] %s64
      %67 = dma.hbm_to_vmem [thread:$0]  %s4, 16, %s65, [#allocation9]
    $region21: #{tpu_custom_call.1} parent=1 // pred_fallthru
      _
    // Predicated region
    $region22: #{tpu_custom_call.1} parent=1 // pred_check
      _
    $region23: #{tpu_custom_call.1} parent=1 // pred_check_branch
      %69 = sbr.rel (0) target = $region25
    $region24: #{tpu_custom_call.1} parent=1 // pred_region
      %70 = dma.done [#allocation3], 64
    $region25: #{tpu_custom_call.1} parent=1 // pred_fallthru
      _
    // Predicated region
    $region26: #{tpu_custom_call.1} parent=1 // pred_check
      _
    $region27: #{tpu_custom_call.1} parent=1 // pred_check_branch
      %72 = sbr.rel (0) target = $region29
    $region28: #{tpu_custom_call.1} parent=1 // pred_region
      %73 = dma.done [#allocation6], 256
    $region29: #{tpu_custom_call.1} parent=1 // pred_fallthru
      _
    // Predicated region
    $region30: #{tpu_custom_call.1} parent=1 // pred_check
      _
    $region31: #{tpu_custom_call.1} parent=1 // pred_check_branch
      %75 = sbr.rel (0) target = $region33
    $region32: #{tpu_custom_call.1} parent=1 // pred_region
      %76 = dma.done [#allocation6], 16
    $region33: #{tpu_custom_call.1} parent=1 // pred_fallthru
      _
    // Predicated region
    $region34: #{tpu_custom_call.1} parent=1 // pred_check
      _
    $region35: #{tpu_custom_call.1} parent=1 // pred_check_branch
      %78 = sbr.rel (0) target = $region37
    $region36: #{tpu_custom_call.1} parent=1 // pred_region
      %79 = dma.done [#allocation9], 512
    $region37: #{tpu_custom_call.1} parent=1 // pred_fallthru
      _
    // Predicated region
    $region38: #{tpu_custom_call.1} parent=1 // pred_check
      _
    $region39: #{tpu_custom_call.1} parent=1 // pred_check_branch
      %81 = sbr.rel (0) target = $region41
    $region40: #{tpu_custom_call.1} parent=1 // pred_region
      %82 = dma.done [#allocation9], 16
    $region41: #{tpu_custom_call.1} parent=1 // pred_fallthru
      _
    %v84 = vld [vmem:[#allocation2] sm:$0xf]
    %v85 = vld [vmem:[#allocation5] sm:$0xf]
    %v86 = vld [vmem:[#allocation5 + $0x4] sm:$0xf]
    %v87 = vld [vmem:[#allocation5 + $0x8] sm:$0xf]
    %v88 = vld [vmem:[#allocation5 + $0xc] sm:$0xf]
    %v89 = vld [vmem:[#allocation7] sm:$0x1]
    %v91 = vlaneseq
    %v92 = vshrl.u32 %v91, 7
    %v93 = vsub.s32 0, %v92
    %v94 = vrot.slane %v89, %v93
    %v100 = vunpack.c.l.b16 %v85
    %v101 = vunpack.c.l.b16 %v86
    %v102 = vunpack.c.l.b16 %v87
    %v103 = vunpack.c.l.b16 %v88
    %v104 = vpack.c.b16 %v101, %v100
    %v105 = vpack.c.b16 %v103, %v102
    %vm108 = vcmask 261120
    %v110 = vsel %vm108, %v84, 0
    %112 = vmatprep.subr.bf16.mxu0 0
    %113 = vmatpush1.bf16.msra.mxu0 %v104
    %114 = vmatprep.subr.bf16.mxu0 0
    %115 = vmatpush1.bf16.msra.mxu0 %v105
    %116 = vmatprep.subr.bf16.mxu0 0
    %117 = vmatpush1.bf16.msra.mxu0 0
    %118 = vmatprep.subr.bf16.mxu0 0
    %119 = vmatpush1.bf16.msra.mxu0 0
    %120 = vmatprep.subr.bf16.mxu0 0
    %121 = vmatpush1.bf16.msra.mxu0 0
    %122 = vmatprep.subr.bf16.mxu0 0
    %123 = vmatpush1.bf16.msra.mxu0 0
    %124 = vmatprep.subr.bf16.mxu0 0
    %125 = vmatpush1.bf16.msra.mxu0 0
    %126 = vmatprep.subr.bf16.mxu0 0
    %127 = vmatpush1.bf16.msra.mxu0 0
    %128 = vmatprep.subr.bf16.mxu0 0
    %129 = vmatpush1.bf16.msra.mxu0 0
    %130 = vmatprep.subr.bf16.mxu0 0
    %131 = vmatpush1.bf16.msra.mxu0 0
    %132 = vmatprep.subr.bf16.mxu0 0
    %133 = vmatpush1.bf16.msra.mxu0 0
    %134 = vmatprep.subr.bf16.mxu0 0
    %135 = vmatpush1.bf16.msra.mxu0 0
    %136 = vmatprep.subr.bf16.mxu0 0
    %137 = vmatpush1.bf16.msra.mxu0 0
    %138 = vmatprep.subr.bf16.mxu0 0
    %139 = vmatpush1.bf16.msra.mxu0 0
    %140 = vmatprep.subr.bf16.mxu0 0
    %141 = vmatpush1.bf16.msra.mxu0 0
    %142 = vmatprep.subr.bf16.mxu0 0
    %143 = vmatpush1.bf16.msra.mxu0 0
    %144 = vmatprep.mubr.bf16.mxu0 0
    %145 = vmatmul.mubr.bf16.gmra.mrb[0].mxu0 %v110
    %v146 = vpop.f32.mrb[0].mxu0
    %v147 = vadd.f32 %v94, %v146
    %v148 = vpop.f32.mrb[0].mxu0
    %v149 = vpop.f32.mrb[0].mxu0
    %v150 = vpop.f32.mrb[0].mxu0
    %151 = vdwg.mxu0
    %v152 = vmax.f32 %v147, 0.0
    %v153 = vpack.c.bf16 %v152, %v152
    %v154 = vld [vmem:[#allocation8] sm:$0xf]
    %v155 = vld [vmem:[#allocation8 + $0x4] sm:$0xf]
    %v156 = vld [vmem:[#allocation8 + $0x8] sm:$0xf]
    %v157 = vld [vmem:[#allocation8 + $0xc] sm:$0xf]
    %v158 = vld [vmem:[#allocation8 + $0x10] sm:$0xf]
    %v159 = vld [vmem:[#allocation8 + $0x14] sm:$0xf]
    %v160 = vld [vmem:[#allocation8 + $0x18] sm:$0xf]
    %v161 = vld [vmem:[#allocation8 + $0x1c] sm:$0xf]
    %v162 = vld [vmem:[#allocation10] sm:$0x1]
    %v164 = vlaneseq
    %v165 = vshrl.u32 %v164, 7
    %v166 = vsub.s32 0, %v165
    %v167 = vrot.slane %v162, %v166
    %v177 = vunpack.c.l.b16 %v154
    %v178 = vunpack.c.l.b16 %v155
    %v179 = vunpack.c.l.b16 %v156
    %v180 = vunpack.c.l.b16 %v157
    %v181 = vunpack.c.l.b16 %v158
    %v182 = vunpack.c.l.b16 %v159
    %v183 = vunpack.c.l.b16 %v160
    %v184 = vunpack.c.l.b16 %v161
    %v185 = vpack.c.b16 %v178, %v177
    %v186 = vpack.c.b16 %v180, %v179
    %v187 = vpack.c.b16 %v182, %v181
    %v188 = vpack.c.b16 %v184, %v183
    %vm193 = vcmask 523264
    %v195 = vsel %vm193, %v153, 0
    %197 = vmatprep.subr.bf16.mxu0 0
    %198 = vmatpush1.bf16.msra.mxu0 %v185
    %199 = vmatprep.subr.bf16.mxu0 0
    %200 = vmatpush1.bf16.msra.mxu0 %v186
    %201 = vmatprep.subr.bf16.mxu0 0
    %202 = vmatpush1.bf16.msra.mxu0 %v187
    %203 = vmatprep.subr.bf16.mxu0 0
    %204 = vmatpush1.bf16.msra.mxu0 %v188
    %205 = vmatprep.subr.bf16.mxu0 0
    %206 = vmatpush1.bf16.msra.mxu0 0
    %207 = vmatprep.subr.bf16.mxu0 0
    %208 = vmatpush1.bf16.msra.mxu0 0
    %209 = vmatprep.subr.bf16.mxu0 0
    %210 = vmatpush1.bf16.msra.mxu0 0
    %211 = vmatprep.subr.bf16.mxu0 0
    %212 = vmatpush1.bf16.msra.mxu0 0
    %213 = vmatprep.subr.bf16.mxu0 0
    %214 = vmatpush1.bf16.msra.mxu0 0
    %215 = vmatprep.subr.bf16.mxu0 0
    %216 = vmatpush1.bf16.msra.mxu0 0
    %217 = vmatprep.subr.bf16.mxu0 0
    %218 = vmatpush1.bf16.msra.mxu0 0
    %219 = vmatprep.subr.bf16.mxu0 0
    %220 = vmatpush1.bf16.msra.mxu0 0
    %221 = vmatprep.subr.bf16.mxu0 0
    %222 = vmatpush1.bf16.msra.mxu0 0
    %223 = vmatprep.subr.bf16.mxu0 0
    %224 = vmatpush1.bf16.msra.mxu0 0
    %225 = vmatprep.subr.bf16.mxu0 0
    %226 = vmatpush1.bf16.msra.mxu0 0
    %227 = vmatprep.subr.bf16.mxu0 0
    %228 = vmatpush1.bf16.msra.mxu0 0
    %229 = vmatprep.mubr.bf16.mxu0 0
    %230 = vmatmul.mubr.bf16.gmra.mrb[0].mxu0 %v195
    %v231 = vpop.f32.mrb[0].mxu0
    %v232 = vadd.f32 %v167, %v231
    %v233 = vpop.f32.mrb[0].mxu0
    %v234 = vpop.f32.mrb[0].mxu0
    %v235 = vpop.f32.mrb[0].mxu0
    %236 = vdwg.mxu0
    %v237 = vsub.f32 0.0, %v232
    %v238 = vmul.f32 %v237, 1.442695
    %v239 = vpow.pop %v238
    %v240 = vadd.f32 %v239, 1.0
    %v241 = vrcp.pop %v240
    %242 = vst [vmem:[#allocation11] sm:$0xff] %v241
    // Predicated region
    $region42: #{tpu_custom_call.1} parent=1 // pred_check
      _
    $region43: #{tpu_custom_call.1} parent=1 // pred_check_branch
      %244 = sbr.rel (0) target = $region45
    $region44: #{tpu_custom_call.1} parent=1 // pred_region
      %s246 = ssub.s32 128, 128
      %247 = vsyncadd [#allocation4], %s246
      %s249 = sshll.u32 [#allocation11], 4
      %s250 = int_to_ptr.vmem [resolvable:$true] %s249
      %252 = dma.vmem_to_hbm [thread:$0]  %s250, 128, %s5, [#allocation4]
    $region45: #{tpu_custom_call.1} parent=1 // pred_fallthru
      _
    // Predicated region
    $region46: #{tpu_custom_call.1} parent=1 // pred_check
      _
    $region47: #{tpu_custom_call.1} parent=1 // pred_check_branch
      %254 = sbr.rel (0) target = $region49
    $region48: #{tpu_custom_call.1} parent=1 // pred_region
      %255 = dma.done [#allocation4], 128
    $region49: #{tpu_custom_call.1} parent=1 // pred_fallthru
      _
    %256 = vsyncpa [#allocation3], 1
    %257 = vsyncpa [#allocation6], 1
    %258 = vsyncpa [#allocation9], 1
    %259 = vsyncpa [#allocation4], 1

</llo_original>
